<compile_context>
chip_gen: v6e
topology: v6e:2x2x1
jax: 0.10.0
libtpu: 0.0.40
codegen_flags: <defaults>
</compile_context>

<pallas_src>
import functools

import jax
import jax.numpy as jnp
from jax import lax
from jax.experimental import pallas as pl
from jax.experimental.pallas import tpu as pltpu

_BIG = 1e30  # effectively-infinite squared norm for padded codebook rows (kept f32)


def _round_up(x, m):
    return ((x + m - 1) // m) * m


def _cdiv(a, b):
    return (a + b - 1) // b


def _vq_kernel(ze_ref, wbd_ref, wg_ref, wsq_ref, zq_ref, partial_ref, *,
               tile_np, sub_np, pack, kp, d_pad, n_valid, need_mask):
    """One grid step over a (tile_np, pack*d_pad) packed tile of ze.

    ze_ref      : (tile_np, lane_w)   packed rows (`pack` original rows per row)
    wbd_ref     : (lane_w, pack*kp)   block-diagonal W^T  (cross-term matmul)
    wg_ref      : (pack*kp, lane_w)   block-diagonal W    (one-hot gather matmul)
    wsq_ref     : (1, pack*kp)        ||w||^2 per segment, BIG on padded rows
    zq_ref      : (tile_np, lane_w)   packed quantized output
    partial_ref : (1, 8, 128)         per-tile partial of sum((zq - ze)^2)
    """
    tile_idx = pl.program_id(0)
    lane_w = pack * d_pad
    n_sub = tile_np // sub_np

    # Hoisted iotas (JAX does not CSE broadcast_in_dim; keep them out of the loop).
    lane_iota_kp = lax.broadcasted_iota(jnp.int32, (sub_np, kp), 1)
    if need_mask:
        row_iota = lax.broadcasted_iota(jnp.int32, (sub_np, lane_w), 0)
        seg_of_lane = lax.broadcasted_iota(jnp.int32, (sub_np, lane_w), 1) // d_pad
        base_orig_row = (tile_idx * tile_np + row_iota) * pack + seg_of_lane
    else:
        base_orig_row = None

    def body(s, acc):
        start = pl.multiple_of(s * sub_np, sub_np)
        ze = ze_ref[pl.ds(start, sub_np), :].astype(jnp.float32)      # (sub, lane_w)

        # argmin_k ||z - w_k||^2 == argmin_k (||w_k||^2 - 2 z.w_k); the block-
        # diagonal wbd gives one independent kp-wide segment per original row,
        # all from a single full-K=128 contraction on the MXU.
        cross = jnp.dot(ze, wbd_ref[...],
                        preferred_element_type=jnp.float32)           # (sub, pack*kp)
        dist = wsq_ref[...] - 2.0 * cross                             # (sub, pack*kp)

        # Per-segment argmin + one-hot gather.  wg's block-diagonal layout drops
        # each segment's selected codebook row straight into that original row's
        # lane slot, so the matmul results accumulate into packed lane-dense zq.
        zq = jnp.zeros((sub_np, lane_w), jnp.float32)
        for j in range(pack):                                         # static unroll
            dj = dist[:, j * kp:(j + 1) * kp]                         # (sub, kp)
            idx_j = jnp.argmin(dj, axis=1, keepdims=True)             # (sub, 1)
            oh_j = (idx_j == lane_iota_kp).astype(jnp.float32)        # (sub, kp)
            zq = zq + jnp.dot(oh_j, wg_ref[pl.ds(j * kp, kp), :],
                              preferred_element_type=jnp.float32)

        zq_ref[pl.ds(start, sub_np), :] = zq.astype(zq_ref.dtype)     # lane-dense store

        # Partial of sum((zq - ze)^2); lanes belonging to padded rows are zeroed.
        diff = zq - ze
        sq = diff * diff
        if need_mask:
            orig_row = base_orig_row + start * pack
            sq = jnp.where(orig_row < n_valid, sq, 0.0)
        return acc + jnp.sum(sq)

    total = lax.fori_loop(0, n_sub, body, jnp.zeros((), jnp.float32))
    partial_ref[...] = jnp.full(partial_ref.shape, total, dtype=jnp.float32)


def vector_quantize(ze, emb_weight, *, tile_rows=8192, sub_rows=1024):
    """Returns (zq, vq_loss) matching VectorQuantizer.forward().

    tile_rows : original rows DMA'd per grid step (big -> amortizes per-step
                pipeline overhead; the kernel is HBM-bound).
    sub_rows  : original rows per in-kernel compute sub-chunk (bounds the
                (sub, pack*kp) f32 intermediates independent of tile size).
    """
    n, d = ze.shape
    k, d2 = emb_weight.shape
    assert d == d2

    # Lane-dense packing: `pack` original rows per 128-lane packed row.
    if d <= 128:
        d_pad = max(1, 1 << (d - 1).bit_length())   # next pow2 >= d (divides 128)
        pack = 128 // d_pad
    else:
        d_pad = _round_up(d, 128)
        pack = 1
    lane_w = pack * d_pad
    kp = max(128, _round_up(k, 128))                # padded codebook rows / segment

    np_rows = _cdiv(n, pack)                        # packed rows of real data

    # Compute sub-chunk (packed rows): multiple of 8 sublanes.
    sub_np = min(_round_up(max(1, sub_rows // pack), 8), _round_up(np_rows, 8))
    sub_np = max(sub_np, 8)

    # DMA tile (packed rows): large, but capped at ~half the work so the
    # "parallel" grid axis keeps both v7x TensorCores busy.
    tile_np = _round_up(max(sub_np, tile_rows // pack), sub_np)
    if np_rows > sub_np:
        tile_np = min(tile_np, _round_up(_cdiv(np_rows, 2), sub_np))
    tile_np = min(tile_np, _round_up(np_rows, sub_np))

    np_pad = _round_up(np_rows, tile_np)
    num_tiles = np_pad // tile_np
    need_mask = (np_pad * pack != n)

    # ---- Wrapper-side constant prep (once per call, not per tile) ----
    w32 = emb_weight.astype(jnp.float32)
    w_pad = jnp.zeros((kp, d_pad), jnp.float32).at[:k, :d].set(w32)
    wsq_row = jnp.full((kp,), _BIG, jnp.float32).at[:k].set(jnp.sum(w32 * w32, axis=1))

    # Block-diagonal codebook matrices:
    #   wbd[j*d_pad:(j+1)*d_pad, j*kp:(j+1)*kp] = W^T  -> cross = ze_packed @ wbd
    #   wg [j*kp:(j+1)*kp, j*d_pad:(j+1)*d_pad] = W    -> zq    = onehot    @ wg
    wbd = jnp.zeros((lane_w, pack * kp), jnp.float32)
    wg = jnp.zeros((pack * kp, lane_w), jnp.float32)
    for j in range(pack):
        wbd = wbd.at[j * d_pad:(j + 1) * d_pad, j * kp:(j + 1) * kp].set(w_pad.T)
        wg = wg.at[j * kp:(j + 1) * kp, j * d_pad:(j + 1) * d_pad].set(w_pad)
    wsq_bd = jnp.tile(wsq_row, (pack,))[None, :]    # (1, pack*kp)

    # Pack ze: (N, d) -> (np_pad, lane_w); zero-pad rows/features as needed.
    if np_pad * pack == n and d_pad == d:
        ze_packed = ze.reshape(np_pad, lane_w)
    else:
        buf = jnp.zeros((np_pad * pack, d_pad), ze.dtype)
        ze_packed = buf.at[:n, :d].set(ze).reshape(np_pad, lane_w)

    kernel = functools.partial(
        _vq_kernel, tile_np=tile_np, sub_np=sub_np, pack=pack, kp=kp,
        d_pad=d_pad, n_valid=n, need_mask=need_mask)

    zq_packed, partials = pl.pallas_call(
        kernel,
        out_shape=(
            jax.ShapeDtypeStruct((np_pad, lane_w), ze.dtype),
            jax.ShapeDtypeStruct((num_tiles, 8, 128), jnp.float32),
        ),
        grid_spec=pltpu.PrefetchScalarGridSpec(
            num_scalar_prefetch=0,
            grid=(num_tiles,),
            in_specs=[
                pl.BlockSpec((tile_np, lane_w), lambda i: (i, 0)),      # ze (packed)
                pl.BlockSpec((lane_w, pack * kp), lambda i: (0, 0)),    # wbd (const)
                pl.BlockSpec((pack * kp, lane_w), lambda i: (0, 0)),    # wg (const)
                pl.BlockSpec((1, pack * kp), lambda i: (0, 0)),         # ||w||^2
            ],
            out_specs=[
                pl.BlockSpec((tile_np, lane_w), lambda i: (i, 0)),      # zq (packed)
                pl.BlockSpec((1, 8, 128), lambda i: (i, 0, 0)),         # loss partial
            ],
        ),
        compiler_params=pltpu.CompilerParams(
            # Tiles fully independent -> shardable across TensorCores (v7x megacore).
            # Peak VMEM with default tiles is ~8 MiB, so the default scoped limit
            # (16 MiB on v5e, 32 MiB on v6e/v7x) needs no vmem_limit_bytes override.
            dimension_semantics=("parallel",),
        ),
    )(ze_packed, wbd, wg, wsq_bd)

    # Unpack: (np_pad, 128) -> (N, d).
    zq = zq_packed[:np_rows].reshape(np_rows * pack, d_pad)[:n, :d]
    # mse(zq.detach(), ze) + mse(zq, ze.detach()) == 2 * mean((zq - ze)^2)
    vq_loss = 2.0 * jnp.sum(partials[:, 0, 0]) / float(n * d)
    # TODO(synk): the straight-through estimator (ze + (zq - ze).detach()) only
    # affects gradients; the forward value returned here is identical.
    return zq, vq_loss


def _reference(ze, w):
    dist = jnp.sum((ze[:, None, :] - w[None, :, :]) ** 2, axis=-1)
    idx = jnp.argmin(dist, axis=1)
    zq = w[idx]
    loss = 2.0 * jnp.mean((zq - ze) ** 2)
    return zq, loss


if __name__ == "__main__":
    # Module config: nclass (n_emb) = 16, emb_dim = 32.  ze: (N, emb_dim).
    n_emb, emb_dim = 16, 32
    key = jax.random.PRNGKey(0)
    k_w, k_z1, k_z2, k_z3 = jax.random.split(key, 4)
    # nn.Embedding default init: N(0, 1)
    emb_weight = jax.random.normal(k_w, (n_emb, emb_dim), dtype=jnp.float32)

    # (1) Small, single tile, no padding (N divisible by the pack factor 4).
    ze_small = jax.random.normal(k_z1, (64, emb_dim), dtype=jnp.float32)
    zq, vq_loss = vector_quantize(ze_small, emb_weight)
    jax.block_until_ready((zq, vq_loss))
    zq_r, loss_r = _reference(ze_small, emb_weight)
    assert zq.shape == (64, emb_dim)
    assert jnp.allclose(zq, zq_r, atol=1e-3), "zq mismatch (small)"
    assert jnp.allclose(vq_loss, loss_r, rtol=1e-3, atol=1e-3), "loss mismatch (small)"

    # (2) Non-multiple N: exercises the padded-row loss-mask path.
    ze_mid = jax.random.normal(k_z2, (1000, emb_dim), dtype=jnp.float32)
    zq_m, loss_m = vector_quantize(ze_mid, emb_weight)
    jax.block_until_ready((zq_m, loss_m))
    zq_mr, loss_mr = _reference(ze_mid, emb_weight)
    assert jnp.allclose(zq_m, zq_mr, atol=1e-3), "zq mismatch (mid)"
    assert jnp.allclose(loss_m, loss_mr, rtol=1e-3, atol=1e-3), "loss mismatch (mid)"

    # (3) Multi-tile + multi-sub-chunk + partially-filled packed row (N % 4 != 0).
    ze_big = jax.random.normal(k_z3, (5003, emb_dim), dtype=jnp.float32)
    zq_b, loss_b = vector_quantize(ze_big, emb_weight, tile_rows=2048, sub_rows=256)
    jax.block_until_ready((zq_b, loss_b))
    zq_br, loss_br = _reference(ze_big, emb_weight)
    assert jnp.allclose(zq_b, zq_br, atol=1e-3), "zq mismatch (big)"
    assert jnp.allclose(loss_b, loss_br, rtol=1e-3, atol=1e-3), "loss mismatch (big)"

    print("KERNEL_OK")
</pallas_src>

<mosaic_0001>
module attributes {stable_mosaic.version = 11 : i64} {
  func.func @_vq_kernel(%arg0: i32, %arg1: memref<16x128xf32, #tpu.memory_space<vmem>>, %arg2: memref<128x512xf32, #tpu.memory_space<vmem>>, %arg3: memref<512x128xf32, #tpu.memory_space<vmem>>, %arg4: memref<1x512xf32, #tpu.memory_space<vmem>>, %arg5: memref<16x128xf32, #tpu.memory_space<vmem>>, %arg6: memref<1x8x128xf32, #tpu.memory_space<vmem>>) attributes {dimension_semantics = [#tpu.dimension_semantics<parallel>], iteration_bounds = array<i64: 1>, scalar_prefetch = 0 : i64, scratch_operands = 0 : i64, tpu.core_type = #tpu.core_type<tc>, window_params = [{transform_indices = @transform_0, window_bounds = array<i64: 16, 128>}, {pipeline_mode = #tpu.pipeline_mode<synchronous>, transform_indices = @transform_1, window_bounds = array<i64: 128, 512>}, {pipeline_mode = #tpu.pipeline_mode<synchronous>, transform_indices = @transform_2, window_bounds = array<i64: 512, 128>}, {pipeline_mode = #tpu.pipeline_mode<synchronous>, transform_indices = @transform_3, window_bounds = array<i64: 1, 512>}, {transform_indices = @transform_4, window_bounds = array<i64: 16, 128>}, {transform_indices = @transform_5, window_bounds = array<i64: 1, 8, 128>}]} {
    %0 = tpu.iota {dimensions = array<i32: 1>} : vector<16x128xi32>
    %cst = arith.constant 0.000000e+00 : f32
    %c0_i32 = arith.constant 0 : i32
    %c16_i32 = arith.constant 16 : i32
    %1 = arith.muli %c0_i32, %c16_i32 : i32
    %2 = tpu.assume_multiple %1, 16 : i32
    %3 = arith.index_cast %2 : i32 to index
    %c0 = arith.constant 0 : index
    %4 = vector.load %arg1[%3, %c0] : memref<16x128xf32, #tpu.memory_space<vmem>>, vector<16x128xf32>
    %c0_0 = arith.constant 0 : index
    %c0_1 = arith.constant 0 : index
    %5 = vector.load %arg2[%c0_0, %c0_1] : memref<128x512xf32, #tpu.memory_space<vmem>>, vector<128x512xf32>
    %cst_2 = arith.constant dense<0.000000e+00> : vector<16x512xf32>
    %6 = tpu.matmul %4, %5, %cst_2 {dimension_numbers = #tpu.dot_dimension_numbers<[1], [0], [0], [1], [0, 0, 1, 1], [], []>} : vector<16x128xf32>, vector<128x512xf32>, vector<16x512xf32> -> vector<16x512xf32>
    %c0_3 = arith.constant 0 : index
    %c0_4 = arith.constant 0 : index
    %7 = vector.load %arg4[%c0_3, %c0_4] : memref<1x512xf32, #tpu.memory_space<vmem>>, vector<1x512xf32>
    %cst_5 = arith.constant 2.000000e+00 : f32
    %8 = vector.broadcast %cst_5 : f32 to vector<16x512xf32>
    %9 = arith.mulf %8, %6 : vector<16x512xf32>
    %10 = vector.broadcast %7 : vector<1x512xf32> to vector<16x512xf32>
    %11 = arith.subf %10, %9 : vector<16x512xf32>
    %cst_6 = arith.constant 0.000000e+00 : f32
    %12 = vector.broadcast %cst_6 : f32 to vector<16x128xf32>
    %13 = vector.extract_strided_slice %11 {offsets = [0, 0], sizes = [16, 128], strides = [1, 1]} : vector<16x512xf32> to vector<16x128xf32>
    %14 = tpu.reduce_index %13 {axis = 1 : i32, kind = #tpu.reduction_kind<arg_min>} : vector<16x128xf32> -> vector<16xi32>
    %15 = vector.shape_cast %14 : vector<16xi32> to vector<16x1xi32>
    %16 = vector.broadcast %15 : vector<16x1xi32> to vector<16x128xi32>
    %17 = arith.cmpi eq, %16, %0 : vector<16x128xi32>
    %18 = arith.extui %17 : vector<16x128xi1> to vector<16x128xi32>
    %19 = arith.sitofp %18 : vector<16x128xi32> to vector<16x128xf32>
    %c0_7 = arith.constant 0 : index
    %c0_8 = arith.constant 0 : index
    %20 = vector.load %arg3[%c0_7, %c0_8] : memref<512x128xf32, #tpu.memory_space<vmem>>, vector<128x128xf32>
    %cst_9 = arith.constant dense<0.000000e+00> : vector<16x128xf32>
    %21 = tpu.matmul %19, %20, %cst_9 {dimension_numbers = #tpu.dot_dimension_numbers<[1], [0], [0], [1], [0, 0, 1, 1], [], []>} : vector<16x128xf32>, vector<128x128xf32>, vector<16x128xf32> -> vector<16x128xf32>
    %22 = arith.addf %12, %21 : vector<16x128xf32>
    %23 = vector.extract_strided_slice %11 {offsets = [0, 128], sizes = [16, 128], strides = [1, 1]} : vector<16x512xf32> to vector<16x128xf32>
    %24 = tpu.reduce_index %23 {axis = 1 : i32, kind = #tpu.reduction_kind<arg_min>} : vector<16x128xf32> -> vector<16xi32>
    %25 = vector.shape_cast %24 : vector<16xi32> to vector<16x1xi32>
    %26 = vector.broadcast %25 : vector<16x1xi32> to vector<16x128xi32>
    %27 = arith.cmpi eq, %26, %0 : vector<16x128xi32>
    %28 = arith.extui %27 : vector<16x128xi1> to vector<16x128xi32>
    %29 = arith.sitofp %28 : vector<16x128xi32> to vector<16x128xf32>
    %c128 = arith.constant 128 : index
    %c0_10 = arith.constant 0 : index
    %30 = vector.load %arg3[%c128, %c0_10] : memref<512x128xf32, #tpu.memory_space<vmem>>, vector<128x128xf32>
    %cst_11 = arith.constant dense<0.000000e+00> : vector<16x128xf32>
    %31 = tpu.matmul %29, %30, %cst_11 {dimension_numbers = #tpu.dot_dimension_numbers<[1], [0], [0], [1], [0, 0, 1, 1], [], []>} : vector<16x128xf32>, vector<128x128xf32>, vector<16x128xf32> -> vector<16x128xf32>
    %32 = arith.addf %22, %31 : vector<16x128xf32>
    %33 = vector.extract_strided_slice %11 {offsets = [0, 256], sizes = [16, 128], strides = [1, 1]} : vector<16x512xf32> to vector<16x128xf32>
    %34 = tpu.reduce_index %33 {axis = 1 : i32, kind = #tpu.reduction_kind<arg_min>} : vector<16x128xf32> -> vector<16xi32>
    %35 = vector.shape_cast %34 : vector<16xi32> to vector<16x1xi32>
    %36 = vector.broadcast %35 : vector<16x1xi32> to vector<16x128xi32>
    %37 = arith.cmpi eq, %36, %0 : vector<16x128xi32>
    %38 = arith.extui %37 : vector<16x128xi1> to vector<16x128xi32>
    %39 = arith.sitofp %38 : vector<16x128xi32> to vector<16x128xf32>
    %c256 = arith.constant 256 : index
    %c0_12 = arith.constant 0 : index
    %40 = vector.load %arg3[%c256, %c0_12] : memref<512x128xf32, #tpu.memory_space<vmem>>, vector<128x128xf32>
    %cst_13 = arith.constant dense<0.000000e+00> : vector<16x128xf32>
    %41 = tpu.matmul %39, %40, %cst_13 {dimension_numbers = #tpu.dot_dimension_numbers<[1], [0], [0], [1], [0, 0, 1, 1], [], []>} : vector<16x128xf32>, vector<128x128xf32>, vector<16x128xf32> -> vector<16x128xf32>
    %42 = arith.addf %32, %41 : vector<16x128xf32>
    %43 = vector.extract_strided_slice %11 {offsets = [0, 384], sizes = [16, 128], strides = [1, 1]} : vector<16x512xf32> to vector<16x128xf32>
    %44 = tpu.reduce_index %43 {axis = 1 : i32, kind = #tpu.reduction_kind<arg_min>} : vector<16x128xf32> -> vector<16xi32>
    %45 = vector.shape_cast %44 : vector<16xi32> to vector<16x1xi32>
    %46 = vector.broadcast %45 : vector<16x1xi32> to vector<16x128xi32>
    %47 = arith.cmpi eq, %46, %0 : vector<16x128xi32>
    %48 = arith.extui %47 : vector<16x128xi1> to vector<16x128xi32>
    %49 = arith.sitofp %48 : vector<16x128xi32> to vector<16x128xf32>
    %c384 = arith.constant 384 : index
    %c0_14 = arith.constant 0 : index
    %50 = vector.load %arg3[%c384, %c0_14] : memref<512x128xf32, #tpu.memory_space<vmem>>, vector<128x128xf32>
    %cst_15 = arith.constant dense<0.000000e+00> : vector<16x128xf32>
    %51 = tpu.matmul %49, %50, %cst_15 {dimension_numbers = #tpu.dot_dimension_numbers<[1], [0], [0], [1], [0, 0, 1, 1], [], []>} : vector<16x128xf32>, vector<128x128xf32>, vector<16x128xf32> -> vector<16x128xf32>
    %52 = arith.addf %42, %51 : vector<16x128xf32>
    %53 = arith.index_cast %2 : i32 to index
    %c0_16 = arith.constant 0 : index
    %54 = vector.load %arg5[%53, %c0_16] : memref<16x128xf32, #tpu.memory_space<vmem>>, vector<16x128xf32>
    tpu.vector_store %arg5[%53, %c0_16], %52 {strides = array<i32>} : memref<16x128xf32, #tpu.memory_space<vmem>>, vector<16x128xf32>,
    %55 = arith.subf %52, %4 : vector<16x128xf32>
    %56 = arith.mulf %55, %55 : vector<16x128xf32>
    %57 = vector.shape_cast %56 : vector<16x128xf32> to vector<1x16x128xf32>
    %cst_17 = arith.constant dense<0.000000e+00> : vector<1xf32>
    %58 = vector.multi_reduction <add>, %57, %cst_17 [1, 2] : vector<1x16x128xf32> to vector<1xf32>
    %59 = vector.shape_cast %58 : vector<1xf32> to vector<1x1x1xf32>
    %60 = vector.extract %59[0, 0, 0] : f32 from vector<1x1x1xf32>
    %61 = arith.addf %cst, %60 : f32
    %c1_i32 = arith.constant 1 : i32
    %62 = vector.broadcast %61 : f32 to vector<1x8x128xf32>
    %c0_18 = arith.constant 0 : index
    %c0_19 = arith.constant 0 : index
    %c0_20 = arith.constant 0 : index
    %63 = vector.load %arg6[%c0_18, %c0_19, %c0_20] : memref<1x8x128xf32, #tpu.memory_space<vmem>>, vector<1x8x128xf32>
    tpu.vector_store %arg6[%c0_18, %c0_19, %c0_20], %62 {strides = array<i32>} : memref<1x8x128xf32, #tpu.memory_space<vmem>>, vector<1x8x128xf32>,
    return
  }
  func.func @transform_0(%arg0: i32) -> (i32, i32) {
    %c0_i32 = arith.constant 0 : i32
    %c0_i32_0 = arith.constant 0 : i32
    return %arg0, %c0_i32 : i32, i32
  }
  func.func @transform_1(%arg0: i32) -> (i32, i32) {
    %c0_i32 = arith.constant 0 : i32
    %c0_i32_0 = arith.constant 0 : i32
    %c0_i32_1 = arith.constant 0 : i32
    return %c0_i32, %c0_i32_0 : i32, i32
  }
  func.func @transform_2(%arg0: i32) -> (i32, i32) {
    %c0_i32 = arith.constant 0 : i32
    %c0_i32_0 = arith.constant 0 : i32
    %c0_i32_1 = arith.constant 0 : i32
    return %c0_i32, %c0_i32_0 : i32, i32
  }
  func.func @transform_3(%arg0: i32) -> (i32, i32) {
    %c0_i32 = arith.constant 0 : i32
    %c0_i32_0 = arith.constant 0 : i32
    %c0_i32_1 = arith.constant 0 : i32
    return %c0_i32, %c0_i32_0 : i32, i32
  }
  func.func @transform_4(%arg0: i32) -> (i32, i32) {
    %c0_i32 = arith.constant 0 : i32
    %c0_i32_0 = arith.constant 0 : i32
    return %arg0, %c0_i32 : i32, i32
  }
  func.func @transform_5(%arg0: i32) -> (i32, i32, i32) {
    %c0_i32 = arith.constant 0 : i32
    %c0_i32_0 = arith.constant 0 : i32
    %c0_i32_1 = arith.constant 0 : i32
    return %arg0, %c0_i32, %c0_i32_0 : i32, i32, i32
  }
}

</mosaic_0001>

<llo_original>
// kernel: tpu_custom_call.1
$region0: #{tpu_custom_call.1}
  #allocation0 [shape = 'u32[]', space=smem, size = 0x4, offset = 0x4, fixed_abs, tag = 'smem constant byte address 0x4 - core index']
  #allocation1 [shape = 'u32[144,128]{1,0:T(1,128)}', space=vmem, size = 0x12000, scoped, tag = 'internal scratch']
  %s0 = inlined_call_operand.hbm [shape: f32[16,128], index: 0, kind: input, shape index: {}]
  %s1 = inlined_call_operand.hbm [shape: f32[128,512], index: 1, kind: input, shape index: {}]
  %s2 = inlined_call_operand.hbm [shape: f32[512,128], index: 2, kind: input, shape index: {}]
  %s3 = inlined_call_operand.vmem [shape: f32[1,512], index: 3, kind: input, shape index: {}]
  %s4 = inlined_call_operand.hbm [shape: f32[16,128], index: 4, kind: output, shape index: {0}]
  %s5 = inlined_call_operand.hbm [shape: f32[1,8,128], index: 5, kind: output, shape index: {1}]
  %6 = xla_tuple %s4, %s5
  %s7 = sld [smem:[#allocation0]]
  $region46: #{tpu_custom_call.1} parent=0
    _
  %s9 = ssub.s32 1, %s7
  %s10 = scalar_select 0, %s9, %s7
  $region1: #{tpu_custom_call.1} parent=0
    #allocation2 [shape = 'u8[8192]{0}', space=vmem, size = 0x2000, scoped, tag = 'input window, operand 0, single buffered']
    #allocation3 [shape = 's32[1]{0}', space=sflag, size = 0x4, scoped, tag = 'scoped memory for tpu_custom_call.1']
    #allocation4 [shape = 's32[1]{0}', space=sflag, size = 0x4, scoped, tag = 'scoped memory for tpu_custom_call.1']
    #allocation5 [shape = 'u8[262144]{0}', space=vmem, size = 0x40000, scoped, tag = 'input window, operand 1, single buffered']
    #allocation6 [shape = 's32[1]{0}', space=sflag, size = 0x4, scoped, tag = 'scoped memory for tpu_custom_call.1']
    #allocation7 [shape = 'u8[262144]{0}', space=vmem, size = 0x40000, scoped, tag = 'input window, operand 2, single buffered']
    #allocation8 [shape = 'u8[8192]{0}', space=vmem, size = 0x2000, scoped, tag = 'output window, operand 0, single buffered']
    #allocation9 [shape = 'u8[4096]{0}', space=vmem, size = 0x1000, scoped, tag = 'output window, operand 1, single buffered']
    #allocation10 [shape = 's32[1]{0}', space=sflag, size = 0x4, scoped, tag = 'scoped memory for tpu_custom_call.1']
    %11 = vsyncpa [#allocation3], 0
    %12 = vsyncpa [#allocation6], 0
    %13 = vsyncpa [#allocation4], 0
    %14 = vsyncpa [#allocation10], 0
    // Predicated region
    $region2: #{tpu_custom_call.1} parent=1 // pred_check
      _
    $region3: #{tpu_custom_call.1} parent=1 // pred_check_branch
      %16 = sbr.rel (0) target = $region5
    $region4: #{tpu_custom_call.1} parent=1 // pred_region
      %s18 = ssub.s32 256, 256
      %19 = vsyncadd [#allocation3], %s18
      %s20 = sshll.u32 [#allocation2], 4
      %s21 = int_to_ptr.vmem [resolvable:$true] %s20
      %26 = dma.hbm_to_vmem [thread:$0]  %s0, 256, %s21, [#allocation3], 128, 128, 8
    $region5: #{tpu_custom_call.1} parent=1 // pred_fallthru
      _
    // Predicated region
    $region6: #{tpu_custom_call.1} parent=1 // pred_check
      _
    $region7: #{tpu_custom_call.1} parent=1 // pred_check_branch
      %28 = sbr.rel (0) target = $region9
    $region8: #{tpu_custom_call.1} parent=1 // pred_region
      %s30 = ssub.s32 8192, 8192
      %31 = vsyncadd [#allocation6], %s30
      %s32 = sshll.u32 [#allocation5], 4
      %s33 = int_to_ptr.vmem [resolvable:$true] %s32
      %38 = dma.hbm_to_vmem [thread:$0]  %s1, 8192, %s33, [#allocation6], 512, 512, 32
    $region9: #{tpu_custom_call.1} parent=1 // pred_fallthru
      _
    // Predicated region
    $region10: #{tpu_custom_call.1} parent=1 // pred_check
      _
    $region11: #{tpu_custom_call.1} parent=1 // pred_check_branch
      %40 = sbr.rel (0) target = $region13
    $region12: #{tpu_custom_call.1} parent=1 // pred_region
      %s42 = ssub.s32 8192, 8192
      %43 = vsyncadd [#allocation6], %s42
      %s44 = sshll.u32 [#allocation7], 4
      %s45 = int_to_ptr.vmem [resolvable:$true] %s44
      %50 = dma.hbm_to_vmem [thread:$0]  %s2, 8192, %s45, [#allocation6], 128, 128, 8
    $region13: #{tpu_custom_call.1} parent=1 // pred_fallthru
      _
    // Predicated region
    $region14: #{tpu_custom_call.1} parent=1 // pred_check
      _
    $region15: #{tpu_custom_call.1} parent=1 // pred_check_branch
      %52 = sbr.rel (0) target = $region17
    $region16: #{tpu_custom_call.1} parent=1 // pred_region
      _
    $region17: #{tpu_custom_call.1} parent=1 // pred_fallthru
      _
    // Predicated region
    $region18: #{tpu_custom_call.1} parent=1 // pred_check
      _
    $region19: #{tpu_custom_call.1} parent=1 // pred_check_branch
      %54 = sbr.rel (0) target = $region21
    $region20: #{tpu_custom_call.1} parent=1 // pred_region
      %55 = dma.done [#allocation3], 256
    $region21: #{tpu_custom_call.1} parent=1 // pred_fallthru
      _
    // Predicated region
    $region22: #{tpu_custom_call.1} parent=1 // pred_check
      _
    $region23: #{tpu_custom_call.1} parent=1 // pred_check_branch
      %57 = sbr.rel (0) target = $region25
    $region24: #{tpu_custom_call.1} parent=1 // pred_region
      %58 = dma.done [#allocation6], 8192
    $region25: #{tpu_custom_call.1} parent=1 // pred_fallthru
      _
    // Predicated region
    $region26: #{tpu_custom_call.1} parent=1 // pred_check
      _
    $region27: #{tpu_custom_call.1} parent=1 // pred_check_branch
      %60 = sbr.rel (0) target = $region29
    $region28: #{tpu_custom_call.1} parent=1 // pred_region
      %61 = dma.done [#allocation6], 8192
    $region29: #{tpu_custom_call.1} parent=1 // pred_fallthru
      _
    %v62 = vlaneseq
    %v63 = vand.u32 %v62, 127
    %v64 = vld [vmem:[#allocation2] sm:$0xff]
    %v65 = vld [vmem:[#allocation2 + $0x8] sm:$0xff]
    %v66 = vld [vmem:[#allocation5] sm:$0xff]
    %v67 = vld [vmem:[#allocation5 + $0x8] sm:$0xff]
    %v68 = vld [vmem:[#allocation5 + $0x10] sm:$0xff]
    %v69 = vld [vmem:[#allocation5 + $0x18] sm:$0xff]
    %v70 = vld [vmem:[#allocation5 + $0x20] sm:$0xff]
    %v71 = vld [vmem:[#allocation5 + $0x28] sm:$0xff]
    %v72 = vld [vmem:[#allocation5 + $0x30] sm:$0xff]
    %v73 = vld [vmem:[#allocation5 + $0x38] sm:$0xff]
    %v74 = vld [vmem:[#allocation5 + $0x40] sm:$0xff]
    %v75 = vld [vmem:[#allocation5 + $0x48] sm:$0xff]
    %v76 = vld [vmem:[#allocation5 + $0x50] sm:$0xff]
    %v77 = vld [vmem:[#allocation5 + $0x58] sm:$0xff]
    %v78 = vld [vmem:[#allocation5 + $0x60] sm:$0xff]
    %v79 = vld [vmem:[#allocation5 + $0x68] sm:$0xff]
    %v80 = vld [vmem:[#allocation5 + $0x70] sm:$0xff]
    %v81 = vld [vmem:[#allocation5 + $0x78] sm:$0xff]
    %v82 = vld [vmem:[#allocation5 + $0x80] sm:$0xff]
    %v83 = vld [vmem:[#allocation5 + $0x88] sm:$0xff]
    %v84 = vld [vmem:[#allocation5 + $0x90] sm:$0xff]
    %v85 = vld [vmem:[#allocation5 + $0x98] sm:$0xff]
    %v86 = vld [vmem:[#allocation5 + $0xa0] sm:$0xff]
    %v87 = vld [vmem:[#allocation5 + $0xa8] sm:$0xff]
    %v88 = vld [vmem:[#allocation5 + $0xb0] sm:$0xff]
    %v89 = vld [vmem:[#allocation5 + $0xb8] sm:$0xff]
    %v90 = vld [vmem:[#allocation5 + $0xc0] sm:$0xff]
    %v91 = vld [vmem:[#allocation5 + $0xc8] sm:$0xff]
    %v92 = vld [vmem:[#allocation5 + $0xd0] sm:$0xff]
    %v93 = vld [vmem:[#allocation5 + $0xd8] sm:$0xff]
    %v94 = vld [vmem:[#allocation5 + $0xe0] sm:$0xff]
    %v95 = vld [vmem:[#allocation5 + $0xe8] sm:$0xff]
    %v96 = vld [vmem:[#allocation5 + $0xf0] sm:$0xff]
    %v97 = vld [vmem:[#allocation5 + $0xf8] sm:$0xff]
    %v98 = vld [vmem:[#allocation5 + $0x100] sm:$0xff]
    %v99 = vld [vmem:[#allocation5 + $0x108] sm:$0xff]
    %v100 = vld [vmem:[#allocation5 + $0x110] sm:$0xff]
    %v101 = vld [vmem:[#allocation5 + $0x118] sm:$0xff]
    %v102 = vld [vmem:[#allocation5 + $0x120] sm:$0xff]
    %v103 = vld [vmem:[#allocation5 + $0x128] sm:$0xff]
    %v104 = vld [vmem:[#allocation5 + $0x130] sm:$0xff]
    %v105 = vld [vmem:[#allocation5 + $0x138] sm:$0xff]
    %v106 = vld [vmem:[#allocation5 + $0x140] sm:$0xff]
    %v107 = vld [vmem:[#allocation5 + $0x148] sm:$0xff]
    %v108 = vld [vmem:[#allocation5 + $0x150] sm:$0xff]
    %v109 = vld [vmem:[#allocation5 + $0x158] sm:$0xff]
    %v110 = vld [vmem:[#allocation5 + $0x160] sm:$0xff]
    %v111 = vld [vmem:[#allocation5 + $0x168] sm:$0xff]
    %v112 = vld [vmem:[#allocation5 + $0x170] sm:$0xff]
    %v113 = vld [vmem:[#allocation5 + $0x178] sm:$0xff]
    %v114 = vld [vmem:[#allocation5 + $0x180] sm:$0xff]
    %v115 = vld [vmem:[#allocation5 + $0x188] sm:$0xff]
    %v116 = vld [vmem:[#allocation5 + $0x190] sm:$0xff]
    %v117 = vld [vmem:[#allocation5 + $0x198] sm:$0xff]
    %v118 = vld [vmem:[#allocation5 + $0x1a0] sm:$0xff]
    %v119 = vld [vmem:[#allocation5 + $0x1a8] sm:$0xff]
    %v120 = vld [vmem:[#allocation5 + $0x1b0] sm:$0xff]
    %v121 = vld [vmem:[#allocation5 + $0x1b8] sm:$0xff]
    %v122 = vld [vmem:[#allocation5 + $0x1c0] sm:$0xff]
    %v123 = vld [vmem:[#allocation5 + $0x1c8] sm:$0xff]
    %v124 = vld [vmem:[#allocation5 + $0x1d0] sm:$0xff]
    %v125 = vld [vmem:[#allocation5 + $0x1d8] sm:$0xff]
    %v126 = vld [vmem:[#allocation5 + $0x1e0] sm:$0xff]
    %v127 = vld [vmem:[#allocation5 + $0x1e8] sm:$0xff]
    %v128 = vld [vmem:[#allocation5 + $0x1f0] sm:$0xff]
    %v129 = vld [vmem:[#allocation5 + $0x1f8] sm:$0xff]
    %130 = vmatprep.subr.mxu0 %v127
    %131 = vmatpush1.msra.mxu0 %v126
    %132 = vmatprep.subr.mxu0 %v123
    %133 = vmatpush1.msra.mxu0 %v122
    %134 = vmatprep.subr.mxu0 %v119
    %135 = vmatpush1.msra.mxu0 %v118
    %136 = vmatprep.subr.mxu0 %v115
    %137 = vmatpush1.msra.mxu0 %v114
    %138 = vmatprep.subr.mxu0 %v111
    %139 = vmatpush1.msra.mxu0 %v110
    %140 = vmatprep.subr.mxu0 %v107
    %141 = vmatpush1.msra.mxu0 %v106
    %142 = vmatprep.subr.mxu0 %v103
    %143 = vmatpush1.msra.mxu0 %v102
    %144 = vmatprep.subr.mxu0 %v99
    %145 = vmatpush1.msra.mxu0 %v98
    %146 = vmatprep.subr.mxu0 %v95
    %147 = vmatpush1.msra.mxu0 %v94
    %148 = vmatprep.subr.mxu0 %v91
    %149 = vmatpush1.msra.mxu0 %v90
    %150 = vmatprep.subr.mxu0 %v87
    %151 = vmatpush1.msra.mxu0 %v86
    %152 = vmatprep.subr.mxu0 %v83
    %153 = vmatpush1.msra.mxu0 %v82
    %154 = vmatprep.subr.mxu0 %v79
    %155 = vmatpush1.msra.mxu0 %v78
    %156 = vmatprep.subr.mxu0 %v75
    %157 = vmatpush1.msra.mxu0 %v74
    %158 = vmatprep.subr.mxu0 %v71
    %159 = vmatpush1.msra.mxu0 %v70
    %160 = vmatprep.subr.mxu0 %v67
    %161 = vmatpush1.msra.mxu0 %v66
    %162 = vmatprep.subr.mxu0 0.0
    %163 = vmatpush2.msra.mxu0 0.0
    %164 = vmatprep.subr.mxu0 0.0
    %165 = vmatpush2.msra.mxu0 0.0
    %166 = vmatprep.subr.mxu0 0.0
    %167 = vmatpush2.msra.mxu0 0.0
    %168 = vmatprep.subr.mxu0 0.0
    %169 = vmatpush2.msra.mxu0 0.0
    %170 = vmatprep.subr.mxu0 0.0
    %171 = vmatpush2.msra.mxu0 0.0
    %172 = vmatprep.subr.mxu0 0.0
    %173 = vmatpush2.msra.mxu0 0.0
    %174 = vmatprep.subr.mxu0 0.0
    %175 = vmatpush2.msra.mxu0 0.0
    %176 = vmatprep.subr.mxu0 0.0
    %177 = vmatpush2.msra.mxu0 0.0
    %178 = vmatprep.subr.mxu0 0.0
    %179 = vmatpush2.msra.mxu0 0.0
    %180 = vmatprep.subr.mxu0 0.0
    %181 = vmatpush2.msra.mxu0 0.0
    %182 = vmatprep.subr.mxu0 0.0
    %183 = vmatpush2.msra.mxu0 0.0
    %184 = vmatprep.subr.mxu0 0.0
    %185 = vmatpush2.msra.mxu0 0.0
    %186 = vmatprep.subr.mxu0 0.0
    %187 = vmatpush2.msra.mxu0 0.0
    %188 = vmatprep.subr.mxu0 0.0
    %189 = vmatpush2.msra.mxu0 0.0
    %190 = vmatprep.subr.mxu0 0.0
    %191 = vmatpush2.msra.mxu0 0.0
    %192 = vmatprep.subr.mxu0 0.0
    %193 = vmatpush2.msra.mxu0 0.0
    %194 = vmatprep.mubr.f32.mxu0 0.0
    %195 = vmatmul.mubr.f32.gmra.mxu0 %v64
    %v196 = vpop.f32.mrf.mxu0
    %v197 = vadd.f32 0.0, %v196
    %v198 = vpop.f32.mrf.mxu0
    %v199 = vadd.f32 0.0, %v198
    %200 = vmatprep.mubr.f32.mxu0 0.0
    %201 = vmatmul.mubr.f32.gmra.mxu0 %v65
    %v202 = vpop.f32.mrf.mxu0
    %v203 = vadd.f32 0.0, %v202
    %v204 = vpop.f32.mrf.mxu0
    %v205 = vadd.f32 0.0, %v204
    %206 = vdwg.mxu0
    %207 = vmatprep.subr.mxu0 %v129
    %208 = vmatpush1.msra.mxu0 %v128
    %209 = vmatprep.subr.mxu0 %v125
    %210 = vmatpush1.msra.mxu0 %v124
    %211 = vmatprep.subr.mxu0 %v121
    %212 = vmatpush1.msra.mxu0 %v120
    %213 = vmatprep.subr.mxu0 %v117
    %214 = vmatpush1.msra.mxu0 %v116
    %215 = vmatprep.subr.mxu0 %v113
    %216 = vmatpush1.msra.mxu0 %v112
    %217 = vmatprep.subr.mxu0 %v109
    %218 = vmatpush1.msra.mxu0 %v108
    %219 = vmatprep.subr.mxu0 %v105
    %220 = vmatpush1.msra.mxu0 %v104
    %221 = vmatprep.subr.mxu0 %v101
    %222 = vmatpush1.msra.mxu0 %v100
    %223 = vmatprep.subr.mxu0 %v97
    %224 = vmatpush1.msra.mxu0 %v96
    %225 = vmatprep.subr.mxu0 %v93
    %226 = vmatpush1.msra.mxu0 %v92
    %227 = vmatprep.subr.mxu0 %v89
    %228 = vmatpush1.msra.mxu0 %v88
    %229 = vmatprep.subr.mxu0 %v85
    %230 = vmatpush1.msra.mxu0 %v84
    %231 = vmatprep.subr.mxu0 %v81
    %232 = vmatpush1.msra.mxu0 %v80
    %233 = vmatprep.subr.mxu0 %v77
    %234 = vmatpush1.msra.mxu0 %v76
    %235 = vmatprep.subr.mxu0 %v73
    %236 = vmatpush1.msra.mxu0 %v72
    %237 = vmatprep.subr.mxu0 %v69
    %238 = vmatpush1.msra.mxu0 %v68
    %239 = vmatprep.subr.mxu0 0.0
    %240 = vmatpush2.msra.mxu0 0.0
    %241 = vmatprep.subr.mxu0 0.0
    %242 = vmatpush2.msra.mxu0 0.0
    %243 = vmatprep.subr.mxu0 0.0
    %244 = vmatpush2.msra.mxu0 0.0
    %245 = vmatprep.subr.mxu0 0.0
    %246 = vmatpush2.msra.mxu0 0.0
    %247 = vmatprep.subr.mxu0 0.0
    %248 = vmatpush2.msra.mxu0 0.0
    %249 = vmatprep.subr.mxu0 0.0
    %250 = vmatpush2.msra.mxu0 0.0
    %251 = vmatprep.subr.mxu0 0.0
    %252 = vmatpush2.msra.mxu0 0.0
    %253 = vmatprep.subr.mxu0 0.0
    %254 = vmatpush2.msra.mxu0 0.0
    %255 = vmatprep.subr.mxu0 0.0
    %256 = vmatpush2.msra.mxu0 0.0
    %257 = vmatprep.subr.mxu0 0.0
    %258 = vmatpush2.msra.mxu0 0.0
    %259 = vmatprep.subr.mxu0 0.0
    %260 = vmatpush2.msra.mxu0 0.0
    %261 = vmatprep.subr.mxu0 0.0
    %262 = vmatpush2.msra.mxu0 0.0
    %263 = vmatprep.subr.mxu0 0.0
    %264 = vmatpush2.msra.mxu0 0.0
    %265 = vmatprep.subr.mxu0 0.0
    %266 = vmatpush2.msra.mxu0 0.0
    %267 = vmatprep.subr.mxu0 0.0
    %268 = vmatpush2.msra.mxu0 0.0
    %269 = vmatprep.subr.mxu0 0.0
    %270 = vmatpush2.msra.mxu0 0.0
    %271 = vmatprep.mubr.f32.mxu0 0.0
    %272 = vmatmul.mubr.f32.gmra.mxu0 %v64
    %v273 = vpop.f32.mrf.mxu0
    %v274 = vadd.f32 0.0, %v273
    %v275 = vpop.f32.mrf.mxu0
    %v276 = vadd.f32 0.0, %v275
    %277 = vmatprep.mubr.f32.mxu0 0.0
    %278 = vmatmul.mubr.f32.gmra.mxu0 %v65
    %v279 = vpop.f32.mrf.mxu0
    %v280 = vadd.f32 0.0, %v279
    %v281 = vpop.f32.mrf.mxu0
    %v282 = vadd.f32 0.0, %v281
    %283 = vdwg.mxu0
    %v284 = vld [vmem:[%s3] sm:$0xf]
    %v285 = vmul.f32 %v197, 2.0
    %v286 = vmul.f32 %v199, 2.0
    %v287 = vmul.f32 %v274, 2.0
    %v288 = vmul.f32 %v276, 2.0
    %v289 = vmul.f32 %v203, 2.0
    %v290 = vmul.f32 %v205, 2.0
    %v291 = vmul.f32 %v280, 2.0
    %v292 = vmul.f32 %v282, 2.0
    %v294 = vlaneseq
    %v295 = vshrl.u32 %v294, 7
    %v296 = vsub.s32 0, %v295
    %v297 = vrot.slane %v284, %v296
    %v298 = vlaneseq
    %v299 = vshrl.u32 %v298, 7
    %v300 = vsub.s32 1, %v299
    %v301 = vrot.slane %v284, %v300
    %v302 = vlaneseq
    %v303 = vshrl.u32 %v302, 7
    %v304 = vsub.s32 2, %v303
    %v305 = vrot.slane %v284, %v304
    %v306 = vlaneseq
    %v307 = vshrl.u32 %v306, 7
    %v308 = vsub.s32 3, %v307
    %v309 = vrot.slane %v284, %v308
    %v314 = vsub.f32 %v297, %v285
    %v315 = vsub.f32 %v301, %v286
    %v316 = vsub.f32 %v305, %v287
    %v317 = vsub.f32 %v309, %v288
    %v318 = vsub.f32 %v297, %v289
    %v319 = vsub.f32 %v301, %v290
    %v320 = vsub.f32 %v305, %v291
    %v321 = vsub.f32 %v309, %v292
    %322 = vmin.index.xlane.f32.xlu0 %v314
    %v323 = vpop.xlane.xlu0 %322
    %324 = vmin.index.xlane.f32.xlu0 %v318
    %v325 = vpop.xlane.xlu0 %324
    %vm326 = vcmp.eq.s32.totalorder %v323, %v63
    %vm327 = vcmp.eq.s32.totalorder %v325, %v63
    %v328 = vsel %vm326, 1, 0
    %v329 = vsel %vm327, 1, 0
    %v330 = vcvt.s32.f32 %v328
    %v331 = vcvt.s32.f32 %v329
    %v332 = vld [vmem:[#allocation7] sm:$0xff]
    %v333 = vld [vmem:[#allocation7 + $0x8] sm:$0xff]
    %v334 = vld [vmem:[#allocation7 + $0x10] sm:$0xff]
    %v335 = vld [vmem:[#allocation7 + $0x18] sm:$0xff]
    %v336 = vld [vmem:[#allocation7 + $0x20] sm:$0xff]
    %v337 = vld [vmem:[#allocation7 + $0x28] sm:$0xff]
    %v338 = vld [vmem:[#allocation7 + $0x30] sm:$0xff]
    %v339 = vld [vmem:[#allocation7 + $0x38] sm:$0xff]
    %v340 = vld [vmem:[#allocation7 + $0x40] sm:$0xff]
    %v341 = vld [vmem:[#allocation7 + $0x48] sm:$0xff]
    %v342 = vld [vmem:[#allocation7 + $0x50] sm:$0xff]
    %v343 = vld [vmem:[#allocation7 + $0x58] sm:$0xff]
    %v344 = vld [vmem:[#allocation7 + $0x60] sm:$0xff]
    %v345 = vld [vmem:[#allocation7 + $0x68] sm:$0xff]
    %v346 = vld [vmem:[#allocation7 + $0x70] sm:$0xff]
    %v347 = vld [vmem:[#allocation7 + $0x78] sm:$0xff]
    %348 = vmin.index.xlane.f32.xlu0 %v315
    %v349 = vpop.xlane.xlu0 %348
    %350 = vmin.index.xlane.f32.xlu0 %v319
    %v351 = vpop.xlane.xlu0 %350
    %vm352 = vcmp.eq.s32.totalorder %v349, %v63
    %vm353 = vcmp.eq.s32.totalorder %v351, %v63
    %v354 = vsel %vm352, 1, 0
    %v355 = vsel %vm353, 1, 0
    %v356 = vcvt.s32.f32 %v354
    %v357 = vcvt.s32.f32 %v355
    %v358 = vld [vmem:[#allocation7 + $0x80] sm:$0xff]
    %v359 = vld [vmem:[#allocation7 + $0x88] sm:$0xff]
    %v360 = vld [vmem:[#allocation7 + $0x90] sm:$0xff]
    %v361 = vld [vmem:[#allocation7 + $0x98] sm:$0xff]
    %v362 = vld [vmem:[#allocation7 + $0xa0] sm:$0xff]
    %v363 = vld [vmem:[#allocation7 + $0xa8] sm:$0xff]
    %v364 = vld [vmem:[#allocation7 + $0xb0] sm:$0xff]
    %v365 = vld [vmem:[#allocation7 + $0xb8] sm:$0xff]
    %v366 = vld [vmem:[#allocation7 + $0xc0] sm:$0xff]
    %v367 = vld [vmem:[#allocation7 + $0xc8] sm:$0xff]
    %v368 = vld [vmem:[#allocation7 + $0xd0] sm:$0xff]
    %v369 = vld [vmem:[#allocation7 + $0xd8] sm:$0xff]
    %v370 = vld [vmem:[#allocation7 + $0xe0] sm:$0xff]
    %v371 = vld [vmem:[#allocation7 + $0xe8] sm:$0xff]
    %v372 = vld [vmem:[#allocation7 + $0xf0] sm:$0xff]
    %v373 = vld [vmem:[#allocation7 + $0xf8] sm:$0xff]
    %374 = vmatprep.subr.mxu0 0.0
    %375 = vmatpush1.msra.mxu0 %v373
    %376 = vmatprep.subr.mxu0 0.0
    %377 = vmatpush1.msra.mxu0 %v372
    %378 = vmatprep.subr.mxu0 0.0
    %379 = vmatpush1.msra.mxu0 %v371
    %380 = vmatprep.subr.mxu0 0.0
    %381 = vmatpush1.msra.mxu0 %v370
    %382 = vmatprep.subr.mxu0 0.0
    %383 = vmatpush1.msra.mxu0 %v369
    %384 = vmatprep.subr.mxu0 0.0
    %385 = vmatpush1.msra.mxu0 %v368
    %386 = vmatprep.subr.mxu0 0.0
    %387 = vmatpush1.msra.mxu0 %v367
    %388 = vmatprep.subr.mxu0 0.0
    %389 = vmatpush1.msra.mxu0 %v366
    %390 = vmatprep.subr.mxu0 0.0
    %391 = vmatpush1.msra.mxu0 %v365
    %392 = vmatprep.subr.mxu0 0.0
    %393 = vmatpush1.msra.mxu0 %v364
    %394 = vmatprep.subr.mxu0 0.0
    %395 = vmatpush1.msra.mxu0 %v363
    %396 = vmatprep.subr.mxu0 0.0
    %397 = vmatpush1.msra.mxu0 %v362
    %398 = vmatprep.subr.mxu0 0.0
    %399 = vmatpush1.msra.mxu0 %v361
    %400 = vmatprep.subr.mxu0 0.0
    %401 = vmatpush1.msra.mxu0 %v360
    %402 = vmatprep.subr.mxu0 0.0
    %403 = vmatpush1.msra.mxu0 %v359
    %404 = vmatprep.subr.mxu0 0.0
    %405 = vmatpush1.msra.mxu0 %v358
    %406 = vmatprep.subr.mxu0 0.0
    %407 = vmatpush2.msra.mxu0 0.0
    %408 = vmatprep.subr.mxu0 0.0
    %409 = vmatpush2.msra.mxu0 0.0
    %410 = vmatprep.subr.mxu0 0.0
    %411 = vmatpush2.msra.mxu0 0.0
    %412 = vmatprep.subr.mxu0 0.0
    %413 = vmatpush2.msra.mxu0 0.0
    %414 = vmatprep.subr.mxu0 0.0
    %415 = vmatpush2.msra.mxu0 0.0
    %416 = vmatprep.subr.mxu0 0.0
    %417 = vmatpush2.msra.mxu0 0.0
    %418 = vmatprep.subr.mxu0 0.0
    %419 = vmatpush2.msra.mxu0 0.0
    %420 = vmatprep.subr.mxu0 0.0
    %421 = vmatpush2.msra.mxu0 0.0
    %422 = vmatprep.subr.mxu0 0.0
    %423 = vmatpush2.msra.mxu0 0.0
    %424 = vmatprep.subr.mxu0 0.0
    %425 = vmatpush2.msra.mxu0 0.0
    %426 = vmatprep.subr.mxu0 0.0
    %427 = vmatpush2.msra.mxu0 0.0
    %428 = vmatprep.subr.mxu0 0.0
    %429 = vmatpush2.msra.mxu0 0.0
    %430 = vmatprep.subr.mxu0 0.0
    %431 = vmatpush2.msra.mxu0 0.0
    %432 = vmatprep.subr.mxu0 0.0
    %433 = vmatpush2.msra.mxu0 0.0
    %434 = vmatprep.subr.mxu0 0.0
    %435 = vmatpush2.msra.mxu0 0.0
    %436 = vmatprep.subr.mxu0 0.0
    %437 = vmatpush2.msra.mxu0 0.0
    %438 = vmatprep.mubr.f32.mxu0 0.0
    %439 = vmatmul.mubr.f32.gmra.mxu0 %v356
    %v440 = vpop.f32.mrf.mxu0
    %v441 = vadd.f32 0.0, %v440
    %v442 = vpop.f32.mrf.mxu0
    %443 = vmatprep.mubr.f32.mxu0 0.0
    %444 = vmatmul.mubr.f32.gmra.mxu0 %v357
    %v445 = vpop.f32.mrf.mxu0
    %v446 = vadd.f32 0.0, %v445
    %v447 = vpop.f32.mrf.mxu0
    %448 = vdwg.mxu0
    %449 = vmatprep.subr.mxu0 0.0
    %450 = vmatpush1.msra.mxu0 %v347
    %451 = vmatprep.subr.mxu0 0.0
    %452 = vmatpush1.msra.mxu0 %v346
    %453 = vmatprep.subr.mxu0 0.0
    %454 = vmatpush1.msra.mxu0 %v345
    %455 = vmatprep.subr.mxu0 0.0
    %456 = vmatpush1.msra.mxu0 %v344
    %457 = vmatprep.subr.mxu0 0.0
    %458 = vmatpush1.msra.mxu0 %v343
    %459 = vmatprep.subr.mxu0 0.0
    %460 = vmatpush1.msra.mxu0 %v342
    %461 = vmatprep.subr.mxu0 0.0
    %462 = vmatpush1.msra.mxu0 %v341
    %463 = vmatprep.subr.mxu0 0.0
    %464 = vmatpush1.msra.mxu0 %v340
    %465 = vmatprep.subr.mxu0 0.0
    %466 = vmatpush1.msra.mxu0 %v339
    %467 = vmatprep.subr.mxu0 0.0
    %468 = vmatpush1.msra.mxu0 %v338
    %469 = vmatprep.subr.mxu0 0.0
    %470 = vmatpush1.msra.mxu0 %v337
    %471 = vmatprep.subr.mxu0 0.0
    %472 = vmatpush1.msra.mxu0 %v336
    %473 = vmatprep.subr.mxu0 0.0
    %474 = vmatpush1.msra.mxu0 %v335
    %475 = vmatprep.subr.mxu0 0.0
    %476 = vmatpush1.msra.mxu0 %v334
    %477 = vmatprep.subr.mxu0 0.0
    %478 = vmatpush1.msra.mxu0 %v333
    %479 = vmatprep.subr.mxu0 0.0
    %480 = vmatpush1.msra.mxu0 %v332
    %481 = vmatprep.subr.mxu0 0.0
    %482 = vmatpush2.msra.mxu0 0.0
    %483 = vmatprep.subr.mxu0 0.0
    %484 = vmatpush2.msra.mxu0 0.0
    %485 = vmatprep.subr.mxu0 0.0
    %486 = vmatpush2.msra.mxu0 0.0
    %487 = vmatprep.subr.mxu0 0.0
    %488 = vmatpush2.msra.mxu0 0.0
    %489 = vmatprep.subr.mxu0 0.0
    %490 = vmatpush2.msra.mxu0 0.0
    %491 = vmatprep.subr.mxu0 0.0
    %492 = vmatpush2.msra.mxu0 0.0
    %493 = vmatprep.subr.mxu0 0.0
    %494 = vmatpush2.msra.mxu0 0.0
    %495 = vmatprep.subr.mxu0 0.0
    %496 = vmatpush2.msra.mxu0 0.0
    %497 = vmatprep.subr.mxu0 0.0
    %498 = vmatpush2.msra.mxu0 0.0
    %499 = vmatprep.subr.mxu0 0.0
    %500 = vmatpush2.msra.mxu0 0.0
    %501 = vmatprep.subr.mxu0 0.0
    %502 = vmatpush2.msra.mxu0 0.0
    %503 = vmatprep.subr.mxu0 0.0
    %504 = vmatpush2.msra.mxu0 0.0
    %505 = vmatprep.subr.mxu0 0.0
    %506 = vmatpush2.msra.mxu0 0.0
    %507 = vmatprep.subr.mxu0 0.0
    %508 = vmatpush2.msra.mxu0 0.0
    %509 = vmatprep.subr.mxu0 0.0
    %510 = vmatpush2.msra.mxu0 0.0
    %511 = vmatprep.subr.mxu0 0.0
    %512 = vmatpush2.msra.mxu0 0.0
    %513 = vmatprep.mubr.f32.mxu0 0.0
    %514 = vmatmul.mubr.f32.gmra.mxu0 %v330
    %v515 = vpop.f32.mrf.mxu0
    %v516 = vadd.f32 %v441, %v515
    %v517 = vpop.f32.mrf.mxu0
    %518 = vmatprep.mubr.f32.mxu0 0.0
    %519 = vmatmul.mubr.f32.gmra.mxu0 %v331
    %v520 = vpop.f32.mrf.mxu0
    %v521 = vadd.f32 %v446, %v520
    %v522 = vpop.f32.mrf.mxu0
    %523 = vdwg.mxu0
    %524 = vmin.index.xlane.f32.xlu0 %v316
    %v525 = vpop.xlane.xlu0 %524
    %526 = vmin.index.xlane.f32.xlu0 %v320
    %v527 = vpop.xlane.xlu0 %526
    %vm528 = vcmp.eq.s32.totalorder %v525, %v63
    %vm529 = vcmp.eq.s32.totalorder %v527, %v63
    %v530 = vsel %vm528, 1, 0
    %v531 = vsel %vm529, 1, 0
    %v532 = vcvt.s32.f32 %v530
    %v533 = vcvt.s32.f32 %v531
    %v534 = vld [vmem:[#allocation7 + $0x100] sm:$0xff]
    %v535 = vld [vmem:[#allocation7 + $0x108] sm:$0xff]
    %v536 = vld [vmem:[#allocation7 + $0x110] sm:$0xff]
    %v537 = vld [vmem:[#allocation7 + $0x118] sm:$0xff]
    %v538 = vld [vmem:[#allocation7 + $0x120] sm:$0xff]
    %v539 = vld [vmem:[#allocation7 + $0x128] sm:$0xff]
    %v540 = vld [vmem:[#allocation7 + $0x130] sm:$0xff]
    %v541 = vld [vmem:[#allocation7 + $0x138] sm:$0xff]
    %v542 = vld [vmem:[#allocation7 + $0x140] sm:$0xff]
    %v543 = vld [vmem:[#allocation7 + $0x148] sm:$0xff]
    %v544 = vld [vmem:[#allocation7 + $0x150] sm:$0xff]
    %v545 = vld [vmem:[#allocation7 + $0x158] sm:$0xff]
    %v546 = vld [vmem:[#allocation7 + $0x160] sm:$0xff]
    %v547 = vld [vmem:[#allocation7 + $0x168] sm:$0xff]
    %v548 = vld [vmem:[#allocation7 + $0x170] sm:$0xff]
    %v549 = vld [vmem:[#allocation7 + $0x178] sm:$0xff]
    %550 = vmatprep.subr.mxu0 0.0
    %551 = vmatpush1.msra.mxu0 %v549
    %552 = vmatprep.subr.mxu0 0.0
    %553 = vmatpush1.msra.mxu0 %v548
    %554 = vmatprep.subr.mxu0 0.0
    %555 = vmatpush1.msra.mxu0 %v547
    %556 = vmatprep.subr.mxu0 0.0
    %557 = vmatpush1.msra.mxu0 %v546
    %558 = vmatprep.subr.mxu0 0.0
    %559 = vmatpush1.msra.mxu0 %v545
    %560 = vmatprep.subr.mxu0 0.0
    %561 = vmatpush1.msra.mxu0 %v544
    %562 = vmatprep.subr.mxu0 0.0
    %563 = vmatpush1.msra.mxu0 %v543
    %564 = vmatprep.subr.mxu0 0.0
    %565 = vmatpush1.msra.mxu0 %v542
    %566 = vmatprep.subr.mxu0 0.0
    %567 = vmatpush1.msra.mxu0 %v541
    %568 = vmatprep.subr.mxu0 0.0
    %569 = vmatpush1.msra.mxu0 %v540
    %570 = vmatprep.subr.mxu0 0.0
    %571 = vmatpush1.msra.mxu0 %v539
    %572 = vmatprep.subr.mxu0 0.0
    %573 = vmatpush1.msra.mxu0 %v538
    %574 = vmatprep.subr.mxu0 0.0
    %575 = vmatpush1.msra.mxu0 %v537
    %576 = vmatprep.subr.mxu0 0.0
    %577 = vmatpush1.msra.mxu0 %v536
    %578 = vmatprep.subr.mxu0 0.0
    %579 = vmatpush1.msra.mxu0 %v535
    %580 = vmatprep.subr.mxu0 0.0
    %581 = vmatpush1.msra.mxu0 %v534
    %582 = vmatprep.subr.mxu0 0.0
    %583 = vmatpush2.msra.mxu0 0.0
    %584 = vmatprep.subr.mxu0 0.0
    %585 = vmatpush2.msra.mxu0 0.0
    %586 = vmatprep.subr.mxu0 0.0
    %587 = vmatpush2.msra.mxu0 0.0
    %588 = vmatprep.subr.mxu0 0.0
    %589 = vmatpush2.msra.mxu0 0.0
    %590 = vmatprep.subr.mxu0 0.0
    %591 = vmatpush2.msra.mxu0 0.0
    %592 = vmatprep.subr.mxu0 0.0
    %593 = vmatpush2.msra.mxu0 0.0
    %594 = vmatprep.subr.mxu0 0.0
    %595 = vmatpush2.msra.mxu0 0.0
    %596 = vmatprep.subr.mxu0 0.0
    %597 = vmatpush2.msra.mxu0 0.0
    %598 = vmatprep.subr.mxu0 0.0
    %599 = vmatpush2.msra.mxu0 0.0
    %600 = vmatprep.subr.mxu0 0.0
    %601 = vmatpush2.msra.mxu0 0.0
    %602 = vmatprep.subr.mxu0 0.0
    %603 = vmatpush2.msra.mxu0 0.0
    %604 = vmatprep.subr.mxu0 0.0
    %605 = vmatpush2.msra.mxu0 0.0
    %606 = vmatprep.subr.mxu0 0.0
    %607 = vmatpush2.msra.mxu0 0.0
    %608 = vmatprep.subr.mxu0 0.0
    %609 = vmatpush2.msra.mxu0 0.0
    %610 = vmatprep.subr.mxu0 0.0
    %611 = vmatpush2.msra.mxu0 0.0
    %612 = vmatprep.subr.mxu0 0.0
    %613 = vmatpush2.msra.mxu0 0.0
    %614 = vmatprep.mubr.f32.mxu0 0.0
    %615 = vmatmul.mubr.f32.gmra.mxu0 %v532
    %v616 = vpop.f32.mrf.mxu0
    %v617 = vadd.f32 0.0, %v616
    %v618 = vpop.f32.mrf.mxu0
    %619 = vmatprep.mubr.f32.mxu0 0.0
    %620 = vmatmul.mubr.f32.gmra.mxu0 %v533
    %v621 = vpop.f32.mrf.mxu0
    %v622 = vadd.f32 0.0, %v621
    %v623 = vpop.f32.mrf.mxu0
    %624 = vdwg.mxu0
    %v625 = vadd.f32 %v516, %v617
    %v626 = vadd.f32 %v521, %v622
    %627 = vmin.index.xlane.f32.xlu0 %v317
    %v628 = vpop.xlane.xlu0 %627
    %629 = vmin.index.xlane.f32.xlu0 %v321
    %v630 = vpop.xlane.xlu0 %629
    %vm631 = vcmp.eq.s32.totalorder %v628, %v63
    %vm632 = vcmp.eq.s32.totalorder %v630, %v63
    %v633 = vsel %vm631, 1, 0
    %v634 = vsel %vm632, 1, 0
    %v635 = vcvt.s32.f32 %v633
    %v636 = vcvt.s32.f32 %v634
    %v637 = vld [vmem:[#allocation7 + $0x180] sm:$0xff]
    %v638 = vld [vmem:[#allocation7 + $0x188] sm:$0xff]
    %v639 = vld [vmem:[#allocation7 + $0x190] sm:$0xff]
    %v640 = vld [vmem:[#allocation7 + $0x198] sm:$0xff]
    %v641 = vld [vmem:[#allocation7 + $0x1a0] sm:$0xff]
    %v642 = vld [vmem:[#allocation7 + $0x1a8] sm:$0xff]
    %v643 = vld [vmem:[#allocation7 + $0x1b0] sm:$0xff]
    %v644 = vld [vmem:[#allocation7 + $0x1b8] sm:$0xff]
    %v645 = vld [vmem:[#allocation7 + $0x1c0] sm:$0xff]
    %v646 = vld [vmem:[#allocation7 + $0x1c8] sm:$0xff]
    %v647 = vld [vmem:[#allocation7 + $0x1d0] sm:$0xff]
    %v648 = vld [vmem:[#allocation7 + $0x1d8] sm:$0xff]
    %v649 = vld [vmem:[#allocation7 + $0x1e0] sm:$0xff]
    %v650 = vld [vmem:[#allocation7 + $0x1e8] sm:$0xff]
    %v651 = vld [vmem:[#allocation7 + $0x1f0] sm:$0xff]
    %v652 = vld [vmem:[#allocation7 + $0x1f8] sm:$0xff]
    %653 = vmatprep.subr.mxu0 0.0
    %654 = vmatpush1.msra.mxu0 %v652
    %655 = vmatprep.subr.mxu0 0.0
    %656 = vmatpush1.msra.mxu0 %v651
    %657 = vmatprep.subr.mxu0 0.0
    %658 = vmatpush1.msra.mxu0 %v650
    %659 = vmatprep.subr.mxu0 0.0
    %660 = vmatpush1.msra.mxu0 %v649
    %661 = vmatprep.subr.mxu0 0.0
    %662 = vmatpush1.msra.mxu0 %v648
    %663 = vmatprep.subr.mxu0 0.0
    %664 = vmatpush1.msra.mxu0 %v647
    %665 = vmatprep.subr.mxu0 0.0
    %666 = vmatpush1.msra.mxu0 %v646
    %667 = vmatprep.subr.mxu0 0.0
    %668 = vmatpush1.msra.mxu0 %v645
    %669 = vmatprep.subr.mxu0 0.0
    %670 = vmatpush1.msra.mxu0 %v644
    %671 = vmatprep.subr.mxu0 0.0
    %672 = vmatpush1.msra.mxu0 %v643
    %673 = vmatprep.subr.mxu0 0.0
    %674 = vmatpush1.msra.mxu0 %v642
    %675 = vmatprep.subr.mxu0 0.0
    %676 = vmatpush1.msra.mxu0 %v641
    %677 = vmatprep.subr.mxu0 0.0
    %678 = vmatpush1.msra.mxu0 %v640
    %679 = vmatprep.subr.mxu0 0.0
    %680 = vmatpush1.msra.mxu0 %v639
    %681 = vmatprep.subr.mxu0 0.0
    %682 = vmatpush1.msra.mxu0 %v638
    %683 = vmatprep.subr.mxu0 0.0
    %684 = vmatpush1.msra.mxu0 %v637
    %685 = vmatprep.subr.mxu0 0.0
    %686 = vmatpush2.msra.mxu0 0.0
    %687 = vmatprep.subr.mxu0 0.0
    %688 = vmatpush2.msra.mxu0 0.0
    %689 = vmatprep.subr.mxu0 0.0
    %690 = vmatpush2.msra.mxu0 0.0
    %691 = vmatprep.subr.mxu0 0.0
    %692 = vmatpush2.msra.mxu0 0.0
    %693 = vmatprep.subr.mxu0 0.0
    %694 = vmatpush2.msra.mxu0 0.0
    %695 = vmatprep.subr.mxu0 0.0
    %696 = vmatpush2.msra.mxu0 0.0
    %697 = vmatprep.subr.mxu0 0.0
    %698 = vmatpush2.msra.mxu0 0.0
    %699 = vmatprep.subr.mxu0 0.0
    %700 = vmatpush2.msra.mxu0 0.0
    %701 = vmatprep.subr.mxu0 0.0
    %702 = vmatpush2.msra.mxu0 0.0
    %703 = vmatprep.subr.mxu0 0.0
    %704 = vmatpush2.msra.mxu0 0.0
    %705 = vmatprep.subr.mxu0 0.0
    %706 = vmatpush2.msra.mxu0 0.0
    %707 = vmatprep.subr.mxu0 0.0
    %708 = vmatpush2.msra.mxu0 0.0
    %709 = vmatprep.subr.mxu0 0.0
    %710 = vmatpush2.msra.mxu0 0.0
    %711 = vmatprep.subr.mxu0 0.0
    %712 = vmatpush2.msra.mxu0 0.0
    %713 = vmatprep.subr.mxu0 0.0
    %714 = vmatpush2.msra.mxu0 0.0
    %715 = vmatprep.subr.mxu0 0.0
    %716 = vmatpush2.msra.mxu0 0.0
    %717 = vmatprep.mubr.f32.mxu0 0.0
    %718 = vmatmul.mubr.f32.gmra.mxu0 %v635
    %v719 = vpop.f32.mrf.mxu0
    %v720 = vadd.f32 0.0, %v719
    %v721 = vpop.f32.mrf.mxu0
    %722 = vmatprep.mubr.f32.mxu0 0.0
    %723 = vmatmul.mubr.f32.gmra.mxu0 %v636
    %v724 = vpop.f32.mrf.mxu0
    %v725 = vadd.f32 0.0, %v724
    %v726 = vpop.f32.mrf.mxu0
    %727 = vdwg.mxu0
    %v728 = vadd.f32 %v625, %v720
    %v729 = vadd.f32 %v626, %v725
    %730 = vst [vmem:[#allocation8] sm:$0xff] %v728
    %731 = vst [vmem:[#allocation8 + $0x8] sm:$0xff] %v729
    %v732 = vsub.f32 %v728, %v64
    %v733 = vsub.f32 %v729, %v65
    %v734 = vmul.f32 %v732, %v732
    %v735 = vmul.f32 %v733, %v733
    %v736 = vadd.f32 %v734, %v735
    %737 = vadd.xlane.f32.xlu0 %v736
    %v738 = vpop.xlane.xlu0 %737
    %v739 = vrot.slane %v738, 4
    %v740 = vadd.f32 %v738, %v739
    %v741 = vrot.slane %v740, 2
    %v742 = vadd.f32 %v740, %v741
    %v743 = vrot.slane %v742, 1
    %v744 = vadd.f32 %v742, %v743
    %s745 = vtos %v744
    %s746 = sadd.f32 %s745, 0.0
    %v747 = vstv %s746
    %748 = vst [vmem:[#allocation9] sm:$0xff] %v747
    // Predicated region
    $region30: #{tpu_custom_call.1} parent=1 // pred_check
      _
    $region31: #{tpu_custom_call.1} parent=1 // pred_check_branch
      %750 = sbr.rel (0) target = $region33
    $region32: #{tpu_custom_call.1} parent=1 // pred_region
      %s752 = ssub.s32 256, 256
      %753 = vsyncadd [#allocation4], %s752
      %s754 = sshll.u32 [#allocation8], 4
      %s755 = int_to_ptr.vmem [resolvable:$true] %s754
      %760 = dma.vmem_to_hbm [thread:$0]  %s755, 256, %s4, [#allocation4], 128, 128, 8
    $region33: #{tpu_custom_call.1} parent=1 // pred_fallthru
      _
    // Predicated region
    $region34: #{tpu_custom_call.1} parent=1 // pred_check
      _
    $region35: #{tpu_custom_call.1} parent=1 // pred_check_branch
      %762 = sbr.rel (0) target = $region37
    $region36: #{tpu_custom_call.1} parent=1 // pred_region
      %s764 = ssub.s32 128, 128
      %765 = vsyncadd [#allocation10], %s764
      %s767 = sshll.u32 [#allocation9], 4
      %s768 = int_to_ptr.vmem [resolvable:$true] %s767
      %770 = dma.vmem_to_hbm [thread:$0]  %s768, 128, %s5, [#allocation10]
    $region37: #{tpu_custom_call.1} parent=1 // pred_fallthru
      _
    // Predicated region
    $region38: #{tpu_custom_call.1} parent=1 // pred_check
      _
    $region39: #{tpu_custom_call.1} parent=1 // pred_check_branch
      %772 = sbr.rel (0) target = $region41
    $region40: #{tpu_custom_call.1} parent=1 // pred_region
      %773 = dma.done [#allocation4], 256
    $region41: #{tpu_custom_call.1} parent=1 // pred_fallthru
      _
    // Predicated region
    $region42: #{tpu_custom_call.1} parent=1 // pred_check
      _
    $region43: #{tpu_custom_call.1} parent=1 // pred_check_branch
      %775 = sbr.rel (0) target = $region45
    $region44: #{tpu_custom_call.1} parent=1 // pred_region
      %776 = dma.done [#allocation10], 128
    $region45: #{tpu_custom_call.1} parent=1 // pred_fallthru
      _
    %777 = vsyncpa [#allocation3], 1
    %778 = vsyncpa [#allocation6], 1
    %779 = vsyncpa [#allocation4], 1
    %780 = vsyncpa [#allocation10], 1

</llo_original>
